<compile_context>
chip_gen: v7x
topology: tpu7x:2x2x1
jax: 0.10.0
libtpu: 0.0.40
codegen_flags: <defaults>
</compile_context>

<pallas_src>
import functools

import jax
import jax.numpy as jnp
from jax.experimental import pallas as pl
from jax.experimental.pallas import tpu as pltpu

BN_EPS = 1e-5


def _round_up(x, m):
    return ((x + m - 1) // m) * m


def _tile_n(out_ch):
    return min(256, _round_up(out_ch, 128))


def _tile_k(in_ch):
    return min(512, _round_up(in_ch, 128))


def prepare_standard_fc_params(weight, bias, gamma, beta, running_mean,
                               running_var, eps=BN_EPS):
    """Fold BatchNorm1d (eval running stats) into the Linear weight/bias, pad the
    N/K dims to lane-dense tile multiples, and cast the weight to bf16.
    Call ONCE outside the hot path (avoids a per-call transpose of W)."""
    out_ch, in_ch = weight.shape
    scale = gamma.astype(jnp.float32) * jax.lax.rsqrt(
        running_var.astype(jnp.float32) + eps)                            # (out_ch,)
    w_folded = (weight.astype(jnp.float32) * scale[:, None]).T            # (in_ch, out_ch)
    b_folded = (bias.astype(jnp.float32) - running_mean) * scale + beta   # (out_ch,)

    kp = _round_up(in_ch, _tile_k(in_ch))
    np_ = _round_up(out_ch, _tile_n(out_ch))
    w_pad = jnp.zeros((kp, np_), jnp.float32).at[:in_ch, :out_ch].set(w_folded)
    b_pad = jnp.zeros((1, np_), jnp.float32).at[:, :out_ch].set(b_folded)
    return w_pad.astype(jnp.bfloat16), b_pad


def _standard_fc_kernel(x_ref, w_ref, b_ref, o_ref, acc_ref):
    # Zero the accumulator at the start of each (i, j) output tile.
    @pl.when(pl.program_id(2) == 0)
    def _():
        acc_ref[...] = jnp.zeros_like(acc_ref)

    # bf16 x bf16 -> f32 accumulate on the MXU.
    acc_ref[...] += jnp.dot(x_ref[...], w_ref[...],
                            preferred_element_type=jnp.float32)

    # Epilogue (folded bias/BN + ReLU) only once the K reduction is complete.
    @pl.when(pl.program_id(2) == pl.num_programs(2) - 1)
    def _():
        y = acc_ref[...] + b_ref[...]
        o_ref[...] = jnp.maximum(y, 0.0).astype(o_ref.dtype)


@functools.partial(jax.jit, static_argnames=("out_ch",))
def standard_fc(x, w_folded, b_folded, out_ch):
    """x: (B, in_ch).  w_folded: (Kp, Np) bf16.  b_folded: (1, Np) f32."""
    B, in_ch = x.shape
    Kp, Np = w_folded.shape

    tm = min(256, _round_up(B, 16))      # 16-row sublane packing for bf16
    tn = min(256, Np)                    # Np is a multiple of 128 (lane-dense)
    tk = min(512, Kp)
    Mp = _round_up(B, tm)

    # Zero-pad x (zeros contribute nothing to the matmul) and cast to bf16.
    x_p = jnp.zeros((Mp, Kp), jnp.bfloat16).at[:B, :in_ch].set(
        x.astype(jnp.bfloat16))

    grid = (Mp // tm, Np // tn, Kp // tk)
    out = pl.pallas_call(
        _standard_fc_kernel,
        out_shape=jax.ShapeDtypeStruct((Mp, Np), jnp.float32),
        grid=grid,
        in_specs=[
            pl.BlockSpec((tm, tk), lambda i, j, k: (i, k)),   # x tile
            pl.BlockSpec((tk, tn), lambda i, j, k: (k, j)),   # folded weight tile
            pl.BlockSpec((1, tn), lambda i, j, k: (0, j)),    # folded bias row (N only)
        ],
        out_specs=pl.BlockSpec((tm, tn), lambda i, j, k: (i, j)),
        scratch_shapes=[pltpu.VMEM((tm, tn), jnp.float32)],
        compiler_params=pltpu.CompilerParams(
            dimension_semantics=("parallel", "parallel", "arbitrary")),
    )(x_p, w_folded, b_folded)

    return out[:B, :out_ch]


if __name__ == "__main__":
    # Small shapes consistent with StandardFC(in_ch=32, out_ch=64).
    B, in_ch, out_ch = 8, 32, 64

    key = jax.random.PRNGKey(0)
    kx, kw, kb, kg, kbe, km, kv = jax.random.split(key, 7)

    x = jax.random.normal(kx, (B, in_ch), dtype=jnp.float32)

    # Parameter init following nn.Linear / nn.BatchNorm1d shapes (non-trivial
    # BN stats so the W/b folding is actually exercised).
    bound = 1.0 / jnp.sqrt(jnp.float32(in_ch))
    weight = jax.random.uniform(kw, (out_ch, in_ch), jnp.float32, -bound, bound)
    bias = jax.random.uniform(kb, (out_ch,), jnp.float32, -bound, bound)
    gamma = jax.random.uniform(kg, (out_ch,), jnp.float32, 0.5, 1.5)
    beta = 0.1 * jax.random.normal(kbe, (out_ch,), dtype=jnp.float32)
    running_mean = 0.1 * jax.random.normal(km, (out_ch,), dtype=jnp.float32)
    running_var = jax.random.uniform(kv, (out_ch,), jnp.float32, 0.5, 1.5)

    # One-time parameter preparation (fold + pad + bf16 cast), then the hot call.
    w_folded, b_folded = prepare_standard_fc_params(
        weight, bias, gamma, beta, running_mean, running_var)
    out = standard_fc(x, w_folded, b_folded, out_ch)
    out = jax.block_until_ready(out)

    # Pure-JAX eval-mode reference (Linear -> BatchNorm1d(eval) -> ReLU; Dropout = identity).
    ref = x @ weight.T + bias
    ref = (ref - running_mean) * (gamma / jnp.sqrt(running_var + BN_EPS)) + beta
    ref = jnp.maximum(ref, 0.0)

    assert out.shape == (B, out_ch)
    # bf16 MXU operands -> relaxed tolerance vs the f32 reference.
    assert jnp.allclose(out, ref, atol=5e-2, rtol=5e-2), float(
        jnp.max(jnp.abs(out - ref)))

    print("KERNEL_OK")
</pallas_src>

<mosaic_0001>
module attributes {stable_mosaic.version = 11 : i64} {
  func.func @_standard_fc_kernel(%arg0: i32, %arg1: i32, %arg2: i32, %arg3: memref<16x128xbf16, #tpu.memory_space<vmem>>, %arg4: memref<128x128xbf16, #tpu.memory_space<vmem>>, %arg5: memref<1x128xf32, #tpu.memory_space<vmem>>, %arg6: memref<16x128xf32, #tpu.memory_space<vmem>>, %arg7: memref<16x128xf32, #tpu.memory_space<vmem>>) attributes {dimension_semantics = [#tpu.dimension_semantics<parallel>, #tpu.dimension_semantics<parallel>, #tpu.dimension_semantics<arbitrary>], iteration_bounds = array<i64: 1, 1, 1>, scalar_prefetch = 0 : i64, scratch_operands = 1 : i64, tpu.core_type = #tpu.core_type<tc>, window_params = [{transform_indices = @transform_0, window_bounds = array<i64: 16, 128>}, {transform_indices = @transform_1, window_bounds = array<i64: 128, 128>}, {transform_indices = @transform_2, window_bounds = array<i64: 1, 128>}, {transform_indices = @transform_3, window_bounds = array<i64: 16, 128>}]} {
    %c0_i32 = arith.constant 0 : i32
    %0 = arith.cmpi eq, %arg2, %c0_i32 : i32
    %1 = arith.extui %0 : i1 to i32
    %c0_i32_0 = arith.constant 0 : i32
    %2 = arith.cmpi ne, %1, %c0_i32_0 : i32
    scf.if %2 {
      %cst_10 = arith.constant 0.000000e+00 : f32
      %12 = vector.broadcast %cst_10 : f32 to vector<16x128xf32>
      %c0_11 = arith.constant 0 : index
      %c0_12 = arith.constant 0 : index
      %13 = vector.load %arg7[%c0_11, %c0_12] : memref<16x128xf32, #tpu.memory_space<vmem>>, vector<16x128xf32>
      tpu.vector_store %arg7[%c0_11, %c0_12], %12 {strides = array<i32>} : memref<16x128xf32, #tpu.memory_space<vmem>>, vector<16x128xf32>,
    } else {
    }
    %c0 = arith.constant 0 : index
    %c0_1 = arith.constant 0 : index
    %3 = vector.load %arg7[%c0, %c0_1] : memref<16x128xf32, #tpu.memory_space<vmem>>, vector<16x128xf32>
    %c0_2 = arith.constant 0 : index
    %c0_3 = arith.constant 0 : index
    %4 = vector.load %arg3[%c0_2, %c0_3] : memref<16x128xbf16, #tpu.memory_space<vmem>>, vector<16x128xbf16>
    %c0_4 = arith.constant 0 : index
    %c0_5 = arith.constant 0 : index
    %5 = vector.load %arg4[%c0_4, %c0_5] : memref<128x128xbf16, #tpu.memory_space<vmem>>, vector<128x128xbf16>
    %cst = arith.constant dense<0.000000e+00> : vector<16x128xf32>
    %6 = tpu.matmul %4, %5, %cst {dimension_numbers = #tpu.dot_dimension_numbers<[1], [0], [0], [1], [0, 0, 1, 1], [], []>} : vector<16x128xbf16>, vector<128x128xbf16>, vector<16x128xf32> -> vector<16x128xf32>
    %7 = arith.addf %3, %6 : vector<16x128xf32>
    %c0_6 = arith.constant 0 : index
    %c0_7 = arith.constant 0 : index
    %8 = vector.load %arg7[%c0_6, %c0_7] : memref<16x128xf32, #tpu.memory_space<vmem>>, vector<16x128xf32>
    tpu.vector_store %arg7[%c0_6, %c0_7], %7 {strides = array<i32>} : memref<16x128xf32, #tpu.memory_space<vmem>>, vector<16x128xf32>,
    %c0_i32_8 = arith.constant 0 : i32
    %9 = arith.cmpi eq, %arg2, %c0_i32_8 : i32
    %10 = arith.extui %9 : i1 to i32
    %c0_i32_9 = arith.constant 0 : i32
    %11 = arith.cmpi ne, %10, %c0_i32_9 : i32
    scf.if %11 {
      %c0_10 = arith.constant 0 : index
      %c0_11 = arith.constant 0 : index
      %12 = vector.load %arg7[%c0_10, %c0_11] : memref<16x128xf32, #tpu.memory_space<vmem>>, vector<16x128xf32>
      %c0_12 = arith.constant 0 : index
      %c0_13 = arith.constant 0 : index
      %13 = vector.load %arg5[%c0_12, %c0_13] : memref<1x128xf32, #tpu.memory_space<vmem>>, vector<1x128xf32>
      %14 = vector.broadcast %13 : vector<1x128xf32> to vector<16x128xf32>
      %15 = arith.addf %12, %14 : vector<16x128xf32>
      %cst_14 = arith.constant 0.000000e+00 : f32
      %16 = vector.broadcast %cst_14 : f32 to vector<16x128xf32>
      %17 = arith.maximumf %15, %16 : vector<16x128xf32>
      %c0_15 = arith.constant 0 : index
      %c0_16 = arith.constant 0 : index
      %18 = vector.load %arg6[%c0_15, %c0_16] : memref<16x128xf32, #tpu.memory_space<vmem>>, vector<16x128xf32>
      tpu.vector_store %arg6[%c0_15, %c0_16], %17 {strides = array<i32>} : memref<16x128xf32, #tpu.memory_space<vmem>>, vector<16x128xf32>,
    } else {
    }
    return
  }
  func.func @transform_0(%arg0: i32, %arg1: i32, %arg2: i32) -> (i32, i32) {
    %c0_i32 = arith.constant 0 : i32
    return %arg0, %arg2 : i32, i32
  }
  func.func @transform_1(%arg0: i32, %arg1: i32, %arg2: i32) -> (i32, i32) {
    %c0_i32 = arith.constant 0 : i32
    return %arg2, %arg1 : i32, i32
  }
  func.func @transform_2(%arg0: i32, %arg1: i32, %arg2: i32) -> (i32, i32) {
    %c0_i32 = arith.constant 0 : i32
    %c0_i32_0 = arith.constant 0 : i32
    return %c0_i32, %arg1 : i32, i32
  }
  func.func @transform_3(%arg0: i32, %arg1: i32, %arg2: i32) -> (i32, i32) {
    %c0_i32 = arith.constant 0 : i32
    return %arg0, %arg1 : i32, i32
  }
}

</mosaic_0001>

<llo_original>
// kernel: standard_fc.1
$region0: #{standard_fc.1}
  #allocation0 [shape = 'u32[]', space=smem, size = 0x4, offset = 0x4, fixed_abs, tag = 'smem constant byte address 0x4 - core index']
  #allocation1 [shape = 'u32[144,128]{1,0:T(1,128)}', space=vmem, size = 0x12000, scoped, tag = 'internal scratch']
  #allocation2 [shape = 'f32[16,128]{1,0:T(8,128)}', space=vmem, size = 0x2000, scoped, tag = 'scratch operand']
  %s0 = inlined_call_operand.vmem [shape: bf16[16,128], index: 0, kind: input, shape index: {}]
  %s1 = inlined_call_operand.hbm [shape: bf16[128,128], index: 1, kind: input, shape index: {}]
  %s2 = inlined_call_operand.vmem [shape: f32[1,128], index: 2, kind: input, shape index: {}]
  %s3 = inlined_call_operand.vmem [shape: f32[16,128], index: 3, kind: output, shape index: {}]
  %s4 = sld [smem:[#allocation0]]
  $region34: #{standard_fc.1} parent=0
    _
  %s6 = ssub.s32 1, %s4
  %s7 = scalar_select 0, %s6, %s4
  $region1: #{standard_fc.1} parent=0
    #allocation3 [shape = 'u8[32768]{0}', space=vmem, size = 0x8000, scoped, tag = 'input window, operand 1, single buffered']
    #allocation4 [shape = 's32[1]{0}', space=sflag, size = 0x4, scoped, tag = 'scoped memory for standard_fc.1']
    %8 = vsyncpa [#allocation4], 0
    // Predicated region
    $region2: #{standard_fc.1} parent=1 // pred_check
      _
    $region3: #{standard_fc.1} parent=1 // pred_check_branch
      %10 = sbr.rel (0) target = $region5
    $region4: #{standard_fc.1} parent=1 // pred_region
      _
    $region5: #{standard_fc.1} parent=1 // pred_fallthru
      _
    // Predicated region
    $region6: #{standard_fc.1} parent=1 // pred_check
      _
    $region7: #{standard_fc.1} parent=1 // pred_check_branch
      %12 = sbr.rel (0) target = $region9
    $region8: #{standard_fc.1} parent=1 // pred_region
      %s14 = ssub.s32 1024, 1024
      %15 = vsyncadd [#allocation4], %s14
      %s16 = sshll.u32 [#allocation3], 4
      %s17 = int_to_ptr.vmem [resolvable:$true] %s16
      %22 = dma.hbm_to_vmem [thread:$0]  %s1, 1024, %s17, [#allocation4], 64, 64, 4
    $region9: #{standard_fc.1} parent=1 // pred_fallthru
      _
    // Predicated region
    $region10: #{standard_fc.1} parent=1 // pred_check
      _
    $region11: #{standard_fc.1} parent=1 // pred_check_branch
      %24 = sbr.rel (0) target = $region13
    $region12: #{standard_fc.1} parent=1 // pred_region
      _
    $region13: #{standard_fc.1} parent=1 // pred_fallthru
      _
    // Predicated region
    $region14: #{standard_fc.1} parent=1 // pred_check
      _
    $region15: #{standard_fc.1} parent=1 // pred_check_branch
      %26 = sbr.rel (0) target = $region17
    $region16: #{standard_fc.1} parent=1 // pred_region
      %27 = dma.done [#allocation4], 1024
    $region17: #{standard_fc.1} parent=1 // pred_fallthru
      _
    %p29 = scmp.eq.s32.totalorder 0, 0
    // Predicated region
    $region18: #{standard_fc.1} parent=1 // pred_check
      %p30 = pneg %p29
    $region19: #{standard_fc.1} parent=1 // pred_check_branch
      %32 = sbr.rel (%p30) target = $region21
    $region20: #{standard_fc.1} parent=1 // pred_region
      %33 = vst [vmem:[#allocation2] sm:$0xff] 0.0
      %34 = vst [vmem:[#allocation2 + $0x8] sm:$0xff] 0.0
    $region21: #{standard_fc.1} parent=1 // pred_fallthru
      _
    %v35 = vld [vmem:[#allocation2] sm:$0xff]
    %v36 = vld [vmem:[#allocation2 + $0x8] sm:$0xff]
    %v37 = vld [vmem:[%s0] sm:$0xf]
    %v38 = vld [vmem:[%s0 + $0x4] sm:$0xf]
    %v39 = vld [vmem:[#allocation3] sm:$0xf]
    %v40 = vld [vmem:[#allocation3 + $0x4] sm:$0xf]
    %v41 = vld [vmem:[#allocation3 + $0x8] sm:$0xf]
    %v42 = vld [vmem:[#allocation3 + $0xc] sm:$0xf]
    %v43 = vld [vmem:[#allocation3 + $0x10] sm:$0xf]
    %v44 = vld [vmem:[#allocation3 + $0x14] sm:$0xf]
    %v45 = vld [vmem:[#allocation3 + $0x18] sm:$0xf]
    %v46 = vld [vmem:[#allocation3 + $0x1c] sm:$0xf]
    %v47 = vld [vmem:[#allocation3 + $0x20] sm:$0xf]
    %v48 = vld [vmem:[#allocation3 + $0x24] sm:$0xf]
    %v49 = vld [vmem:[#allocation3 + $0x28] sm:$0xf]
    %v50 = vld [vmem:[#allocation3 + $0x2c] sm:$0xf]
    %v51 = vld [vmem:[#allocation3 + $0x30] sm:$0xf]
    %v52 = vld [vmem:[#allocation3 + $0x34] sm:$0xf]
    %v53 = vld [vmem:[#allocation3 + $0x38] sm:$0xf]
    %v54 = vld [vmem:[#allocation3 + $0x3c] sm:$0xf]
    %v57 = vunpack.c.l.b16 %v37
    %v58 = vunpack.c.l.b16 %v38
    %v59 = vpack.c.b16 %v58, %v57
    %v77 = vunpack.c.l.b16 %v39
    %v78 = vunpack.c.l.b16 %v40
    %v79 = vunpack.c.l.b16 %v41
    %v80 = vunpack.c.l.b16 %v42
    %v81 = vunpack.c.l.b16 %v43
    %v82 = vunpack.c.l.b16 %v44
    %v83 = vunpack.c.l.b16 %v45
    %v84 = vunpack.c.l.b16 %v46
    %v85 = vunpack.c.l.b16 %v47
    %v86 = vunpack.c.l.b16 %v48
    %v87 = vunpack.c.l.b16 %v49
    %v88 = vunpack.c.l.b16 %v50
    %v89 = vunpack.c.l.b16 %v51
    %v90 = vunpack.c.l.b16 %v52
    %v91 = vunpack.c.l.b16 %v53
    %v92 = vunpack.c.l.b16 %v54
    %v93 = vpack.c.b16 %v78, %v77
    %v94 = vpack.c.b16 %v80, %v79
    %v95 = vpack.c.b16 %v82, %v81
    %v96 = vpack.c.b16 %v84, %v83
    %v97 = vpack.c.b16 %v86, %v85
    %v98 = vpack.c.b16 %v88, %v87
    %v99 = vpack.c.b16 %v90, %v89
    %v100 = vpack.c.b16 %v92, %v91
    %109 = vmatprep.subr.bf16.mxu0 0
    %110 = vmatpush1.bf16.msra.mxu0 %v93
    %111 = vmatprep.subr.bf16.mxu0 0
    %112 = vmatpush1.bf16.msra.mxu0 %v94
    %113 = vmatprep.subr.bf16.mxu0 0
    %114 = vmatpush1.bf16.msra.mxu0 %v95
    %115 = vmatprep.subr.bf16.mxu0 0
    %116 = vmatpush1.bf16.msra.mxu0 %v96
    %117 = vmatprep.subr.bf16.mxu0 0
    %118 = vmatpush1.bf16.msra.mxu0 %v97
    %119 = vmatprep.subr.bf16.mxu0 0
    %120 = vmatpush1.bf16.msra.mxu0 %v98
    %121 = vmatprep.subr.bf16.mxu0 0
    %122 = vmatpush1.bf16.msra.mxu0 %v99
    %123 = vmatprep.subr.bf16.mxu0 0
    %124 = vmatpush1.bf16.msra.mxu0 %v100
    %125 = vmatprep.subr.bf16.mxu0 0
    %126 = vmatpush1.bf16.msra.mxu0 0
    %127 = vmatprep.subr.bf16.mxu0 0
    %128 = vmatpush1.bf16.msra.mxu0 0
    %129 = vmatprep.subr.bf16.mxu0 0
    %130 = vmatpush1.bf16.msra.mxu0 0
    %131 = vmatprep.subr.bf16.mxu0 0
    %132 = vmatpush1.bf16.msra.mxu0 0
    %133 = vmatprep.subr.bf16.mxu0 0
    %134 = vmatpush1.bf16.msra.mxu0 0
    %135 = vmatprep.subr.bf16.mxu0 0
    %136 = vmatpush1.bf16.msra.mxu0 0
    %137 = vmatprep.subr.bf16.mxu0 0
    %138 = vmatpush1.bf16.msra.mxu0 0
    %139 = vmatprep.subr.bf16.mxu0 0
    %140 = vmatpush1.bf16.msra.mxu0 0
    %141 = vmatprep.mubr.bf16.mxu0 0
    %142 = vmatmul.mubr.bf16.gmra.mrb[0].mxu0 %v59
    %v143 = vpop.f32.mrb[0].mxu0
    %v144 = vadd.f32 0.0, %v143
    %v145 = vpop.f32.mrb[0].mxu0
    %v146 = vpop.f32.mrb[0].mxu0
    %v147 = vadd.f32 0.0, %v146
    %v148 = vpop.f32.mrb[0].mxu0
    %149 = vdwg.mxu0
    %v150 = vadd.f32 %v35, %v144
    %v151 = vadd.f32 %v36, %v147
    %152 = vst [vmem:[#allocation2] sm:$0xff] %v150
    %153 = vst [vmem:[#allocation2 + $0x8] sm:$0xff] %v151
    // Predicated region
    $region22: #{standard_fc.1} parent=1 // pred_check
      %p154 = pneg %p29
    $region23: #{standard_fc.1} parent=1 // pred_check_branch
      %156 = sbr.rel (%p154) target = $region25
    $region24: #{standard_fc.1} parent=1 // pred_region
      %v157 = vld [vmem:[#allocation2] sm:$0xff]
      %v158 = vld [vmem:[#allocation2 + $0x8] sm:$0xff]
      %v159 = vld [vmem:[%s2] sm:$0x1]
      %v161 = vlaneseq
      %v162 = vshrl.u32 %v161, 7
      %v163 = vsub.s32 0, %v162
      %v164 = vrot.slane %v159, %v163
      %v166 = vadd.f32 %v157, %v164
      %v167 = vadd.f32 %v158, %v164
      %v168 = vmax.f32 %v166, 0.0
      %v169 = vmax.f32 %v167, 0.0
      %170 = vst [vmem:[%s3] sm:$0xff] %v168
      %171 = vst [vmem:[%s3 + $0x8] sm:$0xff] %v169
    $region25: #{standard_fc.1} parent=1 // pred_fallthru
      _
    // Predicated region
    $region26: #{standard_fc.1} parent=1 // pred_check
      _
    $region27: #{standard_fc.1} parent=1 // pred_check_branch
      %173 = sbr.rel (0) target = $region29
    $region28: #{standard_fc.1} parent=1 // pred_region
      _
    $region29: #{standard_fc.1} parent=1 // pred_fallthru
      _
    // Predicated region
    $region30: #{standard_fc.1} parent=1 // pred_check
      _
    $region31: #{standard_fc.1} parent=1 // pred_check_branch
      %175 = sbr.rel (0) target = $region33
    $region32: #{standard_fc.1} parent=1 // pred_region
      _
    $region33: #{standard_fc.1} parent=1 // pred_fallthru
      _
    %176 = vsyncpa [#allocation4], 1

</llo_original>
